<compile_context>
chip_gen: v7x
topology: tpu7x:2x2x1
jax: 0.10.0
libtpu: 0.0.40
codegen_flags: <defaults>
</compile_context>

<pallas_src>
import jax
import jax.numpy as jnp
from jax.experimental import pallas as pl
from jax.experimental.pallas import tpu as pltpu

PACK = 8  # logical rows packed into the lane dimension per physical row


def trunk_kernel(x_ref, w1_ref, b1_ref, wh_ref, bh_ref, w7_ref, b7_ref, o_ref):
    # Layer 1 (D_in -> H), packed: (tm_p, 8*D_in) @ (8*D_in, 8*H)
    y = jnp.tanh(jnp.dot(x_ref[...], w1_ref[...],
                         preferred_element_type=jnp.float32) + b1_ref[...])
    # Hidden layers: linear2, linear3, linear4, linear5, linear5 again
    # (linear6 exists in __init__ but is never used in forward).
    for k in (0, 1, 2, 3, 3):
        y = jnp.tanh(jnp.dot(y, wh_ref[k],
                             preferred_element_type=jnp.float32) + bh_ref[k])
    # Final linear (no tanh).  Scale n*a1 is folded into all weights/biases in
    # the wrapper.  Output is (tm_p, 8*D_out) = (tm_p, 128): full-width,
    # unmasked lane-dense stores with zero padded columns.
    o_ref[...] = (jnp.dot(y, w7_ref[...],
                          preferred_element_type=jnp.float32)
                  + b7_ref[...]).astype(o_ref.dtype)


def _block_diag(w, p):
    """blockdiag of p copies of w: (in, out) -> (p*in, p*out)."""
    return jnp.kron(jnp.eye(p, dtype=w.dtype), w)


def trunk_net_pallas(x, params, *, tm=512):
    """x: (N, D_in) float32.  params: dict of weights/biases in (in, out) layout.

    tm: logical-row tile (multiple of 64).  512 keeps the packed activations
    at ~16 f32 vregs per layer (no spill) while amortizing the ~0.35 us
    per-grid-step overhead.
    """
    N, D_in = x.shape
    H = params["w1"].shape[1]
    D_out = params["w7"].shape[1]
    P = PACK
    ALIGN = P * 8  # packed (physical) tile rows must be sublane(8)-aligned

    # ---- row tiling (cdiv + zero-row padding, no divisibility assert) -------
    tm = max(ALIGN, (tm // ALIGN) * ALIGN)
    N_align = pl.cdiv(N, ALIGN) * ALIGN
    tm = min(tm, N_align)
    # v7x has two TensorCores: when there is more than one tile's worth of
    # rows, cap the tile so the grid has >= 2 "parallel" steps to shard.
    if N_align > tm:
        half = pl.cdiv(pl.cdiv(N_align, 2), ALIGN) * ALIGN
        tm = min(tm, half)
    n_blocks = pl.cdiv(N_align, tm)
    N_pad = n_blocks * tm
    x_pad = x if N_pad == N else jnp.pad(x, ((0, N_pad - N), (0, 0)))

    # ---- lane packing: 8 logical rows per physical row (free row-major view)
    xp = x_pad.reshape(N_pad // P, P * D_in)

    # ---- fold scale into weights/biases, build block-diagonal packed weights
    s = params["scale"][0]  # n*a1 (== 1.0); tanh(s*(yW+b)) == tanh(y(sW)+sb)
    w1p = _block_diag(s * params["w1"], P)                       # (8*D_in, 8*H)
    b1p = jnp.tile(s * params["b1"], (1, P))                     # (1, 8*H)
    wh = jnp.stack([_block_diag(s * params[k], P)
                    for k in ("w2", "w3", "w4", "w5")])          # (4, 8*H, 8*H)
    bh = jnp.stack([jnp.tile(s * params[k], (1, P))
                    for k in ("b2", "b3", "b4", "b5")])          # (4, 1, 8*H)
    w7p = _block_diag(s * params["w7"], P)                       # (8*H, 8*D_out)
    b7p = jnp.tile(s * params["b7"], (1, P))                     # (1, 8*D_out)
    # TODO(synk): optional bf16 activations/weights (f32 accumulation) for
    #             v6e/v7x once the 1e-5 tolerance is deliberately relaxed.

    tm_p = tm // P
    weight_args = (w1p, b1p, wh, bh, w7p, b7p)

    def resident(a):
        # Full-array VMEM block with a constant index_map -> Pallas DMAs it in
        # once and keeps it resident across all grid steps.
        nd = a.ndim
        return pl.BlockSpec(a.shape, lambda i: (0,) * nd)

    out = pl.pallas_call(
        trunk_kernel,
        out_shape=jax.ShapeDtypeStruct((N_pad // P, P * D_out), jnp.float32),
        grid_spec=pltpu.PrefetchScalarGridSpec(
            num_scalar_prefetch=0,
            grid=(n_blocks,),
            in_specs=[pl.BlockSpec((tm_p, P * D_in), lambda i: (i, 0))]
                     + [resident(a) for a in weight_args],
            out_specs=pl.BlockSpec((tm_p, P * D_out), lambda i: (i, 0)),
        ),
        compiler_params=pltpu.CompilerParams(
            dimension_semantics=("parallel",)),
    )(xp, *weight_args)

    # Unpack: (N_pad/8, 8*D_out) -> (N_pad, D_out) is a free row-major view;
    # then drop only the padded rows (no wide column-slice copy).
    y = out.reshape(N_pad, D_out)
    return y if N_pad == N else y[:N]


def init_params(key, D_in, H, D_out):
    """Deterministic synthetic init mirroring the module's __init__ shapes.
    Layers 1-4: normal(0, std) weights / normal(0,1) biases as in the module.
    Layers 5 and 7: PyTorch-default-like uniform(-1/sqrt(fan_in), 1/sqrt(fan_in))."""
    ks = jax.random.split(key, 16)

    def normal_w(k, fan_in, fan_out, std):
        return std * jax.random.normal(k, (fan_in, fan_out), jnp.float32)

    def uniform_w(k, fan_in, fan_out):
        lim = 1.0 / jnp.sqrt(jnp.float32(fan_in))
        return jax.random.uniform(k, (fan_in, fan_out), jnp.float32, -lim, lim)

    def uniform_b(k, fan_in, fan_out):
        lim = 1.0 / jnp.sqrt(jnp.float32(fan_in))
        return jax.random.uniform(k, (1, fan_out), jnp.float32, -lim, lim)

    p = {}
    p["w1"] = normal_w(ks[0], D_in, H, float(jnp.sqrt(2.0 / (D_in + H))))
    p["b1"] = jax.random.normal(ks[1], (1, H), jnp.float32)
    p["w2"] = normal_w(ks[2], H, H, float(jnp.sqrt(2.0 / (H + H))))
    p["b2"] = jax.random.normal(ks[3], (1, H), jnp.float32)
    p["w3"] = normal_w(ks[4], H, H, float(jnp.sqrt(2.0 / (H + H))))
    p["b3"] = jax.random.normal(ks[5], (1, H), jnp.float32)
    p["w4"] = normal_w(ks[6], H, H, float(jnp.sqrt(2.0 / (H + D_out))))
    p["b4"] = jax.random.normal(ks[7], (1, H), jnp.float32)
    p["w5"] = uniform_w(ks[8], H, H)
    p["b5"] = uniform_b(ks[9], H, H)
    # linear6 exists in __init__ but is never used in forward -> not materialized.
    p["w7"] = uniform_w(ks[10], H, D_out)
    p["b7"] = uniform_b(ks[11], H, D_out)
    # a1 = 0.1, n = 1 / a1  -> scale n*a1 = 1.0
    a1 = jnp.float32(0.1)
    p["scale"] = jnp.reshape((1.0 / a1) * a1, (1,)).astype(jnp.float32)
    return p


def trunk_net_ref(x, p):
    """Pure-JAX reference of the exact PyTorch forward."""
    s = p["scale"][0]
    y1 = jnp.tanh(s * (x  @ p["w1"] + p["b1"]))
    y2 = jnp.tanh(s * (y1 @ p["w2"] + p["b2"]))
    y3 = jnp.tanh(s * (y2 @ p["w3"] + p["b3"]))
    y4 = jnp.tanh(s * (y3 @ p["w4"] + p["b4"]))
    y5 = jnp.tanh(s * (y4 @ p["w5"] + p["b5"]))
    y6 = jnp.tanh(s * (y5 @ p["w5"] + p["b5"]))   # linear5 reused, as in the module
    return s * (y6 @ p["w7"] + p["b7"])


if __name__ == "__main__":
    D_in, H, D_out = 2, 32, 16   # trunk net: coordinate -> basis
    key = jax.random.PRNGKey(0)
    kx, kp = jax.random.split(key)
    params = init_params(kp, D_in, H, D_out)

    # Main check: N=64 -> single grid step, single packed (8, 16) tile.
    N = 64
    x = jax.random.uniform(kx, (N, D_in), jnp.float32, -1.0, 1.0)
    out = jax.block_until_ready(trunk_net_pallas(x, params))
    ref = trunk_net_ref(x, params)
    assert out.shape == (N, D_out)
    assert jnp.allclose(out, ref, atol=1e-5, rtol=1e-5), "mismatch vs reference"

    # Ragged + multi-block check: N not a multiple of 64, several grid steps
    # (exercises cdiv, zero-row padding, and the resident-weight index maps).
    N2 = 200
    x2 = jax.random.uniform(jax.random.PRNGKey(1), (N2, D_in), jnp.float32, -1.0, 1.0)
    out2 = jax.block_until_ready(trunk_net_pallas(x2, params, tm=64))
    ref2 = trunk_net_ref(x2, params)
    assert out2.shape == (N2, D_out)
    assert jnp.allclose(out2, ref2, atol=1e-5, rtol=1e-5), "ragged mismatch vs reference"

    print("KERNEL_OK")
</pallas_src>

<mosaic_0001>
module attributes {stable_mosaic.version = 11 : i64} {
  func.func @trunk_kernel(%arg0: i32, %arg1: memref<8x16xf32, #tpu.memory_space<vmem>>, %arg2: memref<16x256xf32, #tpu.memory_space<vmem>>, %arg3: memref<1x256xf32, #tpu.memory_space<vmem>>, %arg4: memref<4x256x256xf32, #tpu.memory_space<vmem>>, %arg5: memref<4x1x256xf32, #tpu.memory_space<vmem>>, %arg6: memref<256x128xf32, #tpu.memory_space<vmem>>, %arg7: memref<1x128xf32, #tpu.memory_space<vmem>>, %arg8: memref<8x128xf32, #tpu.memory_space<vmem>>) attributes {dimension_semantics = [#tpu.dimension_semantics<parallel>], iteration_bounds = array<i64: 1>, scalar_prefetch = 0 : i64, scratch_operands = 0 : i64, tpu.core_type = #tpu.core_type<tc>, window_params = [{transform_indices = @transform_0, window_bounds = array<i64: 8, 16>}, {pipeline_mode = #tpu.pipeline_mode<synchronous>, transform_indices = @transform_1, window_bounds = array<i64: 16, 256>}, {pipeline_mode = #tpu.pipeline_mode<synchronous>, transform_indices = @transform_2, window_bounds = array<i64: 1, 256>}, {pipeline_mode = #tpu.pipeline_mode<synchronous>, transform_indices = @transform_3, window_bounds = array<i64: 4, 256, 256>}, {pipeline_mode = #tpu.pipeline_mode<synchronous>, transform_indices = @transform_4, window_bounds = array<i64: 4, 1, 256>}, {pipeline_mode = #tpu.pipeline_mode<synchronous>, transform_indices = @transform_5, window_bounds = array<i64: 256, 128>}, {pipeline_mode = #tpu.pipeline_mode<synchronous>, transform_indices = @transform_6, window_bounds = array<i64: 1, 128>}, {transform_indices = @transform_7, window_bounds = array<i64: 8, 128>}]} {
    %c0 = arith.constant 0 : index
    %c0_0 = arith.constant 0 : index
    %0 = vector.load %arg1[%c0, %c0_0] : memref<8x16xf32, #tpu.memory_space<vmem>>, vector<8x16xf32>
    %c0_1 = arith.constant 0 : index
    %c0_2 = arith.constant 0 : index
    %1 = vector.load %arg2[%c0_1, %c0_2] : memref<16x256xf32, #tpu.memory_space<vmem>>, vector<16x256xf32>
    %cst = arith.constant dense<0.000000e+00> : vector<8x256xf32>
    %2 = tpu.matmul %0, %1, %cst {dimension_numbers = #tpu.dot_dimension_numbers<[1], [0], [0], [1], [0, 0, 1, 1], [], []>} : vector<8x16xf32>, vector<16x256xf32>, vector<8x256xf32> -> vector<8x256xf32>
    %c0_3 = arith.constant 0 : index
    %c0_4 = arith.constant 0 : index
    %3 = vector.load %arg3[%c0_3, %c0_4] : memref<1x256xf32, #tpu.memory_space<vmem>>, vector<1x256xf32>
    %4 = vector.broadcast %3 : vector<1x256xf32> to vector<8x256xf32>
    %5 = arith.addf %2, %4 : vector<8x256xf32>
    %6 = math.tanh %5 : vector<8x256xf32>
    %c0_5 = arith.constant 0 : index
    %c0_6 = arith.constant 0 : index
    %c0_7 = arith.constant 0 : index
    %7 = vector.load %arg4[%c0_5, %c0_6, %c0_7] : memref<4x256x256xf32, #tpu.memory_space<vmem>>, vector<1x256x256xf32>
    %8 = vector.shape_cast %7 : vector<1x256x256xf32> to vector<256x256xf32>
    %cst_8 = arith.constant dense<0.000000e+00> : vector<8x256xf32>
    %9 = tpu.matmul %6, %8, %cst_8 {dimension_numbers = #tpu.dot_dimension_numbers<[1], [0], [0], [1], [0, 0, 1, 1], [], []>} : vector<8x256xf32>, vector<256x256xf32>, vector<8x256xf32> -> vector<8x256xf32>
    %c0_9 = arith.constant 0 : index
    %c0_10 = arith.constant 0 : index
    %c0_11 = arith.constant 0 : index
    %10 = vector.load %arg5[%c0_9, %c0_10, %c0_11] : memref<4x1x256xf32, #tpu.memory_space<vmem>>, vector<1x1x256xf32>
    %11 = vector.shape_cast %10 : vector<1x1x256xf32> to vector<1x256xf32>
    %12 = vector.broadcast %11 : vector<1x256xf32> to vector<8x256xf32>
    %13 = arith.addf %9, %12 : vector<8x256xf32>
    %14 = math.tanh %13 : vector<8x256xf32>
    %c1 = arith.constant 1 : index
    %c0_12 = arith.constant 0 : index
    %c0_13 = arith.constant 0 : index
    %15 = vector.load %arg4[%c1, %c0_12, %c0_13] : memref<4x256x256xf32, #tpu.memory_space<vmem>>, vector<1x256x256xf32>
    %16 = vector.shape_cast %15 : vector<1x256x256xf32> to vector<256x256xf32>
    %cst_14 = arith.constant dense<0.000000e+00> : vector<8x256xf32>
    %17 = tpu.matmul %14, %16, %cst_14 {dimension_numbers = #tpu.dot_dimension_numbers<[1], [0], [0], [1], [0, 0, 1, 1], [], []>} : vector<8x256xf32>, vector<256x256xf32>, vector<8x256xf32> -> vector<8x256xf32>
    %c1_15 = arith.constant 1 : index
    %c0_16 = arith.constant 0 : index
    %c0_17 = arith.constant 0 : index
    %18 = vector.load %arg5[%c1_15, %c0_16, %c0_17] : memref<4x1x256xf32, #tpu.memory_space<vmem>>, vector<1x1x256xf32>
    %19 = vector.shape_cast %18 : vector<1x1x256xf32> to vector<1x256xf32>
    %20 = vector.broadcast %19 : vector<1x256xf32> to vector<8x256xf32>
    %21 = arith.addf %17, %20 : vector<8x256xf32>
    %22 = math.tanh %21 : vector<8x256xf32>
    %c2 = arith.constant 2 : index
    %c0_18 = arith.constant 0 : index
    %c0_19 = arith.constant 0 : index
    %23 = vector.load %arg4[%c2, %c0_18, %c0_19] : memref<4x256x256xf32, #tpu.memory_space<vmem>>, vector<1x256x256xf32>
    %24 = vector.shape_cast %23 : vector<1x256x256xf32> to vector<256x256xf32>
    %cst_20 = arith.constant dense<0.000000e+00> : vector<8x256xf32>
    %25 = tpu.matmul %22, %24, %cst_20 {dimension_numbers = #tpu.dot_dimension_numbers<[1], [0], [0], [1], [0, 0, 1, 1], [], []>} : vector<8x256xf32>, vector<256x256xf32>, vector<8x256xf32> -> vector<8x256xf32>
    %c2_21 = arith.constant 2 : index
    %c0_22 = arith.constant 0 : index
    %c0_23 = arith.constant 0 : index
    %26 = vector.load %arg5[%c2_21, %c0_22, %c0_23] : memref<4x1x256xf32, #tpu.memory_space<vmem>>, vector<1x1x256xf32>
    %27 = vector.shape_cast %26 : vector<1x1x256xf32> to vector<1x256xf32>
    %28 = vector.broadcast %27 : vector<1x256xf32> to vector<8x256xf32>
    %29 = arith.addf %25, %28 : vector<8x256xf32>
    %30 = math.tanh %29 : vector<8x256xf32>
    %c3 = arith.constant 3 : index
    %c0_24 = arith.constant 0 : index
    %c0_25 = arith.constant 0 : index
    %31 = vector.load %arg4[%c3, %c0_24, %c0_25] : memref<4x256x256xf32, #tpu.memory_space<vmem>>, vector<1x256x256xf32>
    %32 = vector.shape_cast %31 : vector<1x256x256xf32> to vector<256x256xf32>
    %cst_26 = arith.constant dense<0.000000e+00> : vector<8x256xf32>
    %33 = tpu.matmul %30, %32, %cst_26 {dimension_numbers = #tpu.dot_dimension_numbers<[1], [0], [0], [1], [0, 0, 1, 1], [], []>} : vector<8x256xf32>, vector<256x256xf32>, vector<8x256xf32> -> vector<8x256xf32>
    %c3_27 = arith.constant 3 : index
    %c0_28 = arith.constant 0 : index
    %c0_29 = arith.constant 0 : index
    %34 = vector.load %arg5[%c3_27, %c0_28, %c0_29] : memref<4x1x256xf32, #tpu.memory_space<vmem>>, vector<1x1x256xf32>
    %35 = vector.shape_cast %34 : vector<1x1x256xf32> to vector<1x256xf32>
    %36 = vector.broadcast %35 : vector<1x256xf32> to vector<8x256xf32>
    %37 = arith.addf %33, %36 : vector<8x256xf32>
    %38 = math.tanh %37 : vector<8x256xf32>
    %c3_30 = arith.constant 3 : index
    %c0_31 = arith.constant 0 : index
    %c0_32 = arith.constant 0 : index
    %39 = vector.load %arg4[%c3_30, %c0_31, %c0_32] : memref<4x256x256xf32, #tpu.memory_space<vmem>>, vector<1x256x256xf32>
    %40 = vector.shape_cast %39 : vector<1x256x256xf32> to vector<256x256xf32>
    %cst_33 = arith.constant dense<0.000000e+00> : vector<8x256xf32>
    %41 = tpu.matmul %38, %40, %cst_33 {dimension_numbers = #tpu.dot_dimension_numbers<[1], [0], [0], [1], [0, 0, 1, 1], [], []>} : vector<8x256xf32>, vector<256x256xf32>, vector<8x256xf32> -> vector<8x256xf32>
    %c3_34 = arith.constant 3 : index
    %c0_35 = arith.constant 0 : index
    %c0_36 = arith.constant 0 : index
    %42 = vector.load %arg5[%c3_34, %c0_35, %c0_36] : memref<4x1x256xf32, #tpu.memory_space<vmem>>, vector<1x1x256xf32>
    %43 = vector.shape_cast %42 : vector<1x1x256xf32> to vector<1x256xf32>
    %44 = vector.broadcast %43 : vector<1x256xf32> to vector<8x256xf32>
    %45 = arith.addf %41, %44 : vector<8x256xf32>
    %46 = math.tanh %45 : vector<8x256xf32>
    %c0_37 = arith.constant 0 : index
    %c0_38 = arith.constant 0 : index
    %47 = vector.load %arg6[%c0_37, %c0_38] : memref<256x128xf32, #tpu.memory_space<vmem>>, vector<256x128xf32>
    %cst_39 = arith.constant dense<0.000000e+00> : vector<8x128xf32>
    %48 = tpu.matmul %46, %47, %cst_39 {dimension_numbers = #tpu.dot_dimension_numbers<[1], [0], [0], [1], [0, 0, 1, 1], [], []>} : vector<8x256xf32>, vector<256x128xf32>, vector<8x128xf32> -> vector<8x128xf32>
    %c0_40 = arith.constant 0 : index
    %c0_41 = arith.constant 0 : index
    %49 = vector.load %arg7[%c0_40, %c0_41] : memref<1x128xf32, #tpu.memory_space<vmem>>, vector<1x128xf32>
    %50 = vector.broadcast %49 : vector<1x128xf32> to vector<8x128xf32>
    %51 = arith.addf %48, %50 : vector<8x128xf32>
    %c0_42 = arith.constant 0 : index
    %c0_43 = arith.constant 0 : index
    %52 = vector.load %arg8[%c0_42, %c0_43] : memref<8x128xf32, #tpu.memory_space<vmem>>, vector<8x128xf32>
    tpu.vector_store %arg8[%c0_42, %c0_43], %51 {strides = array<i32>} : memref<8x128xf32, #tpu.memory_space<vmem>>, vector<8x128xf32>,
    return
  }
  func.func @transform_0(%arg0: i32) -> (i32, i32) {
    %c0_i32 = arith.constant 0 : i32
    %c0_i32_0 = arith.constant 0 : i32
    return %arg0, %c0_i32 : i32, i32
  }
  func.func @transform_1(%arg0: i32) -> (i32, i32) {
    %c0_i32 = arith.constant 0 : i32
    %c0_i32_0 = arith.constant 0 : i32
    %c0_i32_1 = arith.constant 0 : i32
    return %c0_i32, %c0_i32_0 : i32, i32
  }
  func.func @transform_2(%arg0: i32) -> (i32, i32) {
    %c0_i32 = arith.constant 0 : i32
    %c0_i32_0 = arith.constant 0 : i32
    %c0_i32_1 = arith.constant 0 : i32
    return %c0_i32, %c0_i32_0 : i32, i32
  }
  func.func @transform_3(%arg0: i32) -> (i32, i32, i32) {
    %c0_i32 = arith.constant 0 : i32
    %c0_i32_0 = arith.constant 0 : i32
    %c0_i32_1 = arith.constant 0 : i32
    %c0_i32_2 = arith.constant 0 : i32
    return %c0_i32, %c0_i32_0, %c0_i32_1 : i32, i32, i32
  }
  func.func @transform_4(%arg0: i32) -> (i32, i32, i32) {
    %c0_i32 = arith.constant 0 : i32
    %c0_i32_0 = arith.constant 0 : i32
    %c0_i32_1 = arith.constant 0 : i32
    %c0_i32_2 = arith.constant 0 : i32
    return %c0_i32, %c0_i32_0, %c0_i32_1 : i32, i32, i32
  }
  func.func @transform_5(%arg0: i32) -> (i32, i32) {
    %c0_i32 = arith.constant 0 : i32
    %c0_i32_0 = arith.constant 0 : i32
    %c0_i32_1 = arith.constant 0 : i32
    return %c0_i32, %c0_i32_0 : i32, i32
  }
  func.func @transform_6(%arg0: i32) -> (i32, i32) {
    %c0_i32 = arith.constant 0 : i32
    %c0_i32_0 = arith.constant 0 : i32
    %c0_i32_1 = arith.constant 0 : i32
    return %c0_i32, %c0_i32_0 : i32, i32
  }
  func.func @transform_7(%arg0: i32) -> (i32, i32) {
    %c0_i32 = arith.constant 0 : i32
    %c0_i32_0 = arith.constant 0 : i32
    return %arg0, %c0_i32 : i32, i32
  }
}

</mosaic_0001>

<llo_original>
// kernel: tpu_custom_call.1
$region0: #{tpu_custom_call.1}
  #allocation0 [shape = 'u32[]', space=smem, size = 0x4, offset = 0x4, fixed_abs, tag = 'smem constant byte address 0x4 - core index']
  #allocation1 [shape = 'u32[144,128]{1,0:T(1,128)}', space=vmem, size = 0x12000, scoped, tag = 'internal scratch']
  %s0 = inlined_call_operand.hbm [shape: f32[8,16], index: 0, kind: input, shape index: {}]
  %s1 = inlined_call_operand.hbm [shape: f32[16,256], index: 1, kind: input, shape index: {}]
  %s2 = inlined_call_operand.vmem [shape: f32[1,256], index: 2, kind: input, shape index: {}]
  %s3 = inlined_call_operand.hbm [shape: f32[4,256,256], index: 3, kind: input, shape index: {}]
  %s4 = inlined_call_operand.vmem [shape: f32[4,1,256], index: 4, kind: input, shape index: {}]
  %s5 = inlined_call_operand.hbm [shape: f32[256,128], index: 5, kind: input, shape index: {}]
  %s6 = inlined_call_operand.vmem [shape: f32[1,128], index: 6, kind: input, shape index: {}]
  %s7 = inlined_call_operand.hbm [shape: f32[8,128], index: 7, kind: output, shape index: {}]
  %s8 = sld [smem:[#allocation0]]
  $region54: #{tpu_custom_call.1} parent=0
    _
  %s10 = ssub.s32 1, %s8
  %s11 = scalar_select 0, %s10, %s8
  $region1: #{tpu_custom_call.1} parent=0
    #allocation2 [shape = 'u8[4096]{0}', space=vmem, size = 0x1000, scoped, tag = 'input window, operand 0, single buffered']
    #allocation3 [shape = 's32[1]{0}', space=sflag, size = 0x4, scoped, tag = 'scoped memory for tpu_custom_call.1']
    #allocation4 [shape = 's32[1]{0}', space=sflag, size = 0x4, scoped, tag = 'scoped memory for tpu_custom_call.1']
    #allocation5 [shape = 'u8[16384]{0}', space=vmem, size = 0x4000, scoped, tag = 'input window, operand 1, single buffered']
    #allocation6 [shape = 's32[1]{0}', space=sflag, size = 0x4, scoped, tag = 'scoped memory for tpu_custom_call.1']
    #allocation7 [shape = 'u8[1048576]{0}', space=vmem, size = 0x100000, scoped, tag = 'input window, operand 3, single buffered']
    #allocation8 [shape = 'u8[131072]{0}', space=vmem, size = 0x20000, scoped, tag = 'input window, operand 5, single buffered']
    #allocation9 [shape = 's32[1]{0}', space=sflag, size = 0x4, scoped, tag = 'scoped memory for tpu_custom_call.1']
    #allocation10 [shape = 'u8[4096]{0}', space=vmem, size = 0x1000, scoped, tag = 'output window, operand 0, single buffered']
    %12 = vsyncpa [#allocation3], 0
    %13 = vsyncpa [#allocation6], 0
    %14 = vsyncpa [#allocation9], 0
    %15 = vsyncpa [#allocation4], 0
    // Predicated region
    $region2: #{tpu_custom_call.1} parent=1 // pred_check
      _
    $region3: #{tpu_custom_call.1} parent=1 // pred_check_branch
      %17 = sbr.rel (0) target = $region5
    $region4: #{tpu_custom_call.1} parent=1 // pred_region
      %s19 = ssub.s32 128, 128
      %20 = vsyncadd [#allocation3], %s19
      %s22 = sshll.u32 [#allocation2], 4
      %s23 = int_to_ptr.vmem [resolvable:$true] %s22
      %25 = dma.hbm_to_vmem [thread:$0]  %s0, 128, %s23, [#allocation3]
    $region5: #{tpu_custom_call.1} parent=1 // pred_fallthru
      _
    // Predicated region
    $region6: #{tpu_custom_call.1} parent=1 // pred_check
      _
    $region7: #{tpu_custom_call.1} parent=1 // pred_check_branch
      %27 = sbr.rel (0) target = $region9
    $region8: #{tpu_custom_call.1} parent=1 // pred_region
      %s29 = ssub.s32 512, 512
      %30 = vsyncadd [#allocation6], %s29
      %s31 = sshll.u32 [#allocation5], 4
      %s32 = int_to_ptr.vmem [resolvable:$true] %s31
      %37 = dma.hbm_to_vmem [thread:$0]  %s1, 512, %s32, [#allocation6], 256, 256, 16
    $region9: #{tpu_custom_call.1} parent=1 // pred_fallthru
      _
    // Predicated region
    $region10: #{tpu_custom_call.1} parent=1 // pred_check
      _
    $region11: #{tpu_custom_call.1} parent=1 // pred_check_branch
      %39 = sbr.rel (0) target = $region13
    $region12: #{tpu_custom_call.1} parent=1 // pred_region
      _
    $region13: #{tpu_custom_call.1} parent=1 // pred_fallthru
      _
    // Predicated region
    $region14: #{tpu_custom_call.1} parent=1 // pred_check
      _
    $region15: #{tpu_custom_call.1} parent=1 // pred_check_branch
      %41 = sbr.rel (0) target = $region17
    $region16: #{tpu_custom_call.1} parent=1 // pred_region
      %s43 = ssub.s32 32768, 32768
      %44 = vsyncadd [#allocation6], %s43
      %s45 = sshll.u32 [#allocation7], 4
      %s46 = int_to_ptr.vmem [resolvable:$true] %s45
      %51 = dma.hbm_to_vmem [thread:$0]  %s3, 32768, %s46, [#allocation6], 256, 256, 16
    $region17: #{tpu_custom_call.1} parent=1 // pred_fallthru
      _
    // Predicated region
    $region18: #{tpu_custom_call.1} parent=1 // pred_check
      _
    $region19: #{tpu_custom_call.1} parent=1 // pred_check_branch
      %53 = sbr.rel (0) target = $region21
    $region20: #{tpu_custom_call.1} parent=1 // pred_region
      _
    $region21: #{tpu_custom_call.1} parent=1 // pred_fallthru
      _
    // Predicated region
    $region22: #{tpu_custom_call.1} parent=1 // pred_check
      _
    $region23: #{tpu_custom_call.1} parent=1 // pred_check_branch
      %55 = sbr.rel (0) target = $region25
    $region24: #{tpu_custom_call.1} parent=1 // pred_region
      %s57 = ssub.s32 4096, 4096
      %58 = vsyncadd [#allocation9], %s57
      %s59 = sshll.u32 [#allocation8], 4
      %s60 = int_to_ptr.vmem [resolvable:$true] %s59
      %65 = dma.hbm_to_vmem [thread:$0]  %s5, 4096, %s60, [#allocation9], 128, 128, 8
    $region25: #{tpu_custom_call.1} parent=1 // pred_fallthru
      _
    // Predicated region
    $region26: #{tpu_custom_call.1} parent=1 // pred_check
      _
    $region27: #{tpu_custom_call.1} parent=1 // pred_check_branch
      %67 = sbr.rel (0) target = $region29
    $region28: #{tpu_custom_call.1} parent=1 // pred_region
      _
    $region29: #{tpu_custom_call.1} parent=1 // pred_fallthru
      _
    // Predicated region
    $region30: #{tpu_custom_call.1} parent=1 // pred_check
      _
    $region31: #{tpu_custom_call.1} parent=1 // pred_check_branch
      %69 = sbr.rel (0) target = $region33
    $region32: #{tpu_custom_call.1} parent=1 // pred_region
      %70 = dma.done [#allocation3], 128
    $region33: #{tpu_custom_call.1} parent=1 // pred_fallthru
      _
    // Predicated region
    $region34: #{tpu_custom_call.1} parent=1 // pred_check
      _
    $region35: #{tpu_custom_call.1} parent=1 // pred_check_branch
      %72 = sbr.rel (0) target = $region37
    $region36: #{tpu_custom_call.1} parent=1 // pred_region
      %73 = dma.done [#allocation6], 512
    $region37: #{tpu_custom_call.1} parent=1 // pred_fallthru
      _
    // Predicated region
    $region38: #{tpu_custom_call.1} parent=1 // pred_check
      _
    $region39: #{tpu_custom_call.1} parent=1 // pred_check_branch
      %75 = sbr.rel (0) target = $region41
    $region40: #{tpu_custom_call.1} parent=1 // pred_region
      %76 = dma.done [#allocation6], 32768
    $region41: #{tpu_custom_call.1} parent=1 // pred_fallthru
      _
    // Predicated region
    $region42: #{tpu_custom_call.1} parent=1 // pred_check
      _
    $region43: #{tpu_custom_call.1} parent=1 // pred_check_branch
      %78 = sbr.rel (0) target = $region45
    $region44: #{tpu_custom_call.1} parent=1 // pred_region
      %79 = dma.done [#allocation9], 4096
    $region45: #{tpu_custom_call.1} parent=1 // pred_fallthru
      _
    %v80 = vld [vmem:[#allocation2] sm:$0xff]
    %v81 = vld [vmem:[#allocation5] sm:$0xff]
    %v82 = vld [vmem:[#allocation5 + $0x8] sm:$0xff]
    %v83 = vld [vmem:[#allocation5 + $0x10] sm:$0xff]
    %v84 = vld [vmem:[#allocation5 + $0x18] sm:$0xff]
    %v85 = vld [vmem:[%s2] sm:$0x3]
    %v87 = vlaneseq
    %v88 = vshrl.u32 %v87, 7
    %v89 = vsub.s32 0, %v88
    %v90 = vrot.slane %v85, %v89
    %v91 = vlaneseq
    %v92 = vshrl.u32 %v91, 7
    %v93 = vsub.s32 1, %v92
    %v94 = vrot.slane %v85, %v93
    %vm97 = vcmask 130048
    %v99 = vsel %vm97, %v80, 0
    %101 = vmatprep.subr.mxu0 %v82
    %102 = vmatpush1.msra.mxu0 %v81
    %103 = vmatprep.subr.mxu0 %v84
    %104 = vmatpush1.msra.mxu0 %v83
    %105 = vmatprep.subr.mxu0 0.0
    %106 = vmatpush1.msra.mxu0 0.0
    %107 = vmatprep.subr.mxu0 0.0
    %108 = vmatpush1.msra.mxu0 0.0
    %109 = vmatprep.subr.mxu0 0.0
    %110 = vmatpush1.msra.mxu0 0.0
    %111 = vmatprep.subr.mxu0 0.0
    %112 = vmatpush1.msra.mxu0 0.0
    %113 = vmatprep.subr.mxu0 0.0
    %114 = vmatpush1.msra.mxu0 0.0
    %115 = vmatprep.subr.mxu0 0.0
    %116 = vmatpush1.msra.mxu0 0.0
    %117 = vmatprep.subr.mxu0 0.0
    %118 = vmatpush1.msra.mxu0 0.0
    %119 = vmatprep.subr.mxu0 0.0
    %120 = vmatpush1.msra.mxu0 0.0
    %121 = vmatprep.subr.mxu0 0.0
    %122 = vmatpush1.msra.mxu0 0.0
    %123 = vmatprep.subr.mxu0 0.0
    %124 = vmatpush1.msra.mxu0 0.0
    %125 = vmatprep.subr.mxu0 0.0
    %126 = vmatpush1.msra.mxu0 0.0
    %127 = vmatprep.subr.mxu0 0.0
    %128 = vmatpush1.msra.mxu0 0.0
    %129 = vmatprep.subr.mxu0 0.0
    %130 = vmatpush1.msra.mxu0 0.0
    %131 = vmatprep.subr.mxu0 0.0
    %132 = vmatpush1.msra.mxu0 0.0
    %133 = vmatprep.subr.mxu0 0.0
    %134 = vmatpush1.msra.mxu0 0.0
    %135 = vmatprep.subr.mxu0 0.0
    %136 = vmatpush1.msra.mxu0 0.0
    %137 = vmatprep.subr.mxu0 0.0
    %138 = vmatpush1.msra.mxu0 0.0
    %139 = vmatprep.subr.mxu0 0.0
    %140 = vmatpush1.msra.mxu0 0.0
    %141 = vmatprep.subr.mxu0 0.0
    %142 = vmatpush1.msra.mxu0 0.0
    %143 = vmatprep.subr.mxu0 0.0
    %144 = vmatpush1.msra.mxu0 0.0
    %145 = vmatprep.subr.mxu0 0.0
    %146 = vmatpush1.msra.mxu0 0.0
    %147 = vmatprep.subr.mxu0 0.0
    %148 = vmatpush1.msra.mxu0 0.0
    %149 = vmatprep.subr.mxu0 0.0
    %150 = vmatpush1.msra.mxu0 0.0
    %151 = vmatprep.subr.mxu0 0.0
    %152 = vmatpush1.msra.mxu0 0.0
    %153 = vmatprep.subr.mxu0 0.0
    %154 = vmatpush1.msra.mxu0 0.0
    %155 = vmatprep.subr.mxu0 0.0
    %156 = vmatpush1.msra.mxu0 0.0
    %157 = vmatprep.subr.mxu0 0.0
    %158 = vmatpush1.msra.mxu0 0.0
    %159 = vmatprep.subr.mxu0 0.0
    %160 = vmatpush1.msra.mxu0 0.0
    %161 = vmatprep.subr.mxu0 0.0
    %162 = vmatpush1.msra.mxu0 0.0
    %163 = vmatprep.subr.mxu0 0.0
    %164 = vmatpush1.msra.mxu0 0.0
    %165 = vmatprep.mubr.f32.mxu0 0.0
    %166 = vmatmul.mubr.f32.gmra.mrb[0].mxu0 %v99
    %v167 = vpop.f32.mrb[0].mxu0
    %v168 = vadd.f32 %v90, %v167
    %v169 = vpop.f32.mrb[0].mxu0
    %v170 = vadd.f32 %v94, %v169
    %171 = vdwg.mxu0
    %v172 = vtanh.pop %v168
    %v173 = vtanh.pop %v170
    %v174 = vld [vmem:[#allocation7] sm:$0xff]
    %v175 = vld [vmem:[#allocation7 + $0x8] sm:$0xff]
    %v176 = vld [vmem:[#allocation7 + $0x10] sm:$0xff]
    %v177 = vld [vmem:[#allocation7 + $0x18] sm:$0xff]
    %v178 = vld [vmem:[#allocation7 + $0x20] sm:$0xff]
    %v179 = vld [vmem:[#allocation7 + $0x28] sm:$0xff]
    %v180 = vld [vmem:[#allocation7 + $0x30] sm:$0xff]
    %v181 = vld [vmem:[#allocation7 + $0x38] sm:$0xff]
    %v182 = vld [vmem:[#allocation7 + $0x40] sm:$0xff]
    %v183 = vld [vmem:[#allocation7 + $0x48] sm:$0xff]
    %v184 = vld [vmem:[#allocation7 + $0x50] sm:$0xff]
    %v185 = vld [vmem:[#allocation7 + $0x58] sm:$0xff]
    %v186 = vld [vmem:[#allocation7 + $0x60] sm:$0xff]
    %v187 = vld [vmem:[#allocation7 + $0x68] sm:$0xff]
    %v188 = vld [vmem:[#allocation7 + $0x70] sm:$0xff]
    %v189 = vld [vmem:[#allocation7 + $0x78] sm:$0xff]
    %v190 = vld [vmem:[#allocation7 + $0x80] sm:$0xff]
    %v191 = vld [vmem:[#allocation7 + $0x88] sm:$0xff]
    %v192 = vld [vmem:[#allocation7 + $0x90] sm:$0xff]
    %v193 = vld [vmem:[#allocation7 + $0x98] sm:$0xff]
    %v194 = vld [vmem:[#allocation7 + $0xa0] sm:$0xff]
    %v195 = vld [vmem:[#allocation7 + $0xa8] sm:$0xff]
    %v196 = vld [vmem:[#allocation7 + $0xb0] sm:$0xff]
    %v197 = vld [vmem:[#allocation7 + $0xb8] sm:$0xff]
    %v198 = vld [vmem:[#allocation7 + $0xc0] sm:$0xff]
    %v199 = vld [vmem:[#allocation7 + $0xc8] sm:$0xff]
    %v200 = vld [vmem:[#allocation7 + $0xd0] sm:$0xff]
    %v201 = vld [vmem:[#allocation7 + $0xd8] sm:$0xff]
    %v202 = vld [vmem:[#allocation7 + $0xe0] sm:$0xff]
    %v203 = vld [vmem:[#allocation7 + $0xe8] sm:$0xff]
    %v204 = vld [vmem:[#allocation7 + $0xf0] sm:$0xff]
    %v205 = vld [vmem:[#allocation7 + $0xf8] sm:$0xff]
    %v206 = vld [vmem:[#allocation7 + $0x100] sm:$0xff]
    %v207 = vld [vmem:[#allocation7 + $0x108] sm:$0xff]
    %v208 = vld [vmem:[#allocation7 + $0x110] sm:$0xff]
    %v209 = vld [vmem:[#allocation7 + $0x118] sm:$0xff]
    %v210 = vld [vmem:[#allocation7 + $0x120] sm:$0xff]
    %v211 = vld [vmem:[#allocation7 + $0x128] sm:$0xff]
    %v212 = vld [vmem:[#allocation7 + $0x130] sm:$0xff]
    %v213 = vld [vmem:[#allocation7 + $0x138] sm:$0xff]
    %v214 = vld [vmem:[#allocation7 + $0x140] sm:$0xff]
    %v215 = vld [vmem:[#allocation7 + $0x148] sm:$0xff]
    %v216 = vld [vmem:[#allocation7 + $0x150] sm:$0xff]
    %v217 = vld [vmem:[#allocation7 + $0x158] sm:$0xff]
    %v218 = vld [vmem:[#allocation7 + $0x160] sm:$0xff]
    %v219 = vld [vmem:[#allocation7 + $0x168] sm:$0xff]
    %v220 = vld [vmem:[#allocation7 + $0x170] sm:$0xff]
    %v221 = vld [vmem:[#allocation7 + $0x178] sm:$0xff]
    %v222 = vld [vmem:[#allocation7 + $0x180] sm:$0xff]
    %v223 = vld [vmem:[#allocation7 + $0x188] sm:$0xff]
    %v224 = vld [vmem:[#allocation7 + $0x190] sm:$0xff]
    %v225 = vld [vmem:[#allocation7 + $0x198] sm:$0xff]
    %v226 = vld [vmem:[#allocation7 + $0x1a0] sm:$0xff]
    %v227 = vld [vmem:[#allocation7 + $0x1a8] sm:$0xff]
    %v228 = vld [vmem:[#allocation7 + $0x1b0] sm:$0xff]
    %v229 = vld [vmem:[#allocation7 + $0x1b8] sm:$0xff]
    %v230 = vld [vmem:[#allocation7 + $0x1c0] sm:$0xff]
    %v231 = vld [vmem:[#allocation7 + $0x1c8] sm:$0xff]
    %v232 = vld [vmem:[#allocation7 + $0x1d0] sm:$0xff]
    %v233 = vld [vmem:[#allocation7 + $0x1d8] sm:$0xff]
    %v234 = vld [vmem:[#allocation7 + $0x1e0] sm:$0xff]
    %v235 = vld [vmem:[#allocation7 + $0x1e8] sm:$0xff]
    %v236 = vld [vmem:[#allocation7 + $0x1f0] sm:$0xff]
    %v237 = vld [vmem:[#allocation7 + $0x1f8] sm:$0xff]
    %v238 = vld [vmem:[%s4] sm:$0x3]
    %v240 = vlaneseq
    %v241 = vshrl.u32 %v240, 7
    %v242 = vsub.s32 0, %v241
    %v243 = vrot.slane %v238, %v242
    %v244 = vlaneseq
    %v245 = vshrl.u32 %v244, 7
    %v246 = vsub.s32 1, %v245
    %v247 = vrot.slane %v238, %v246
    %250 = vmatprep.subr.mxu0 %v175
    %251 = vmatpush1.msra.mxu0 %v174
    %252 = vmatprep.subr.mxu0 %v177
    %253 = vmatpush1.msra.mxu0 %v176
    %254 = vmatprep.subr.mxu0 %v179
    %255 = vmatpush1.msra.mxu0 %v178
    %256 = vmatprep.subr.mxu0 %v181
    %257 = vmatpush1.msra.mxu0 %v180
    %258 = vmatprep.subr.mxu0 %v183
    %259 = vmatpush1.msra.mxu0 %v182
    %260 = vmatprep.subr.mxu0 %v185
    %261 = vmatpush1.msra.mxu0 %v184
    %262 = vmatprep.subr.mxu0 %v187
    %263 = vmatpush1.msra.mxu0 %v186
    %264 = vmatprep.subr.mxu0 %v189
    %265 = vmatpush1.msra.mxu0 %v188
    %266 = vmatprep.subr.mxu0 %v191
    %267 = vmatpush1.msra.mxu0 %v190
    %268 = vmatprep.subr.mxu0 %v193
    %269 = vmatpush1.msra.mxu0 %v192
    %270 = vmatprep.subr.mxu0 %v195
    %271 = vmatpush1.msra.mxu0 %v194
    %272 = vmatprep.subr.mxu0 %v197
    %273 = vmatpush1.msra.mxu0 %v196
    %274 = vmatprep.subr.mxu0 %v199
    %275 = vmatpush1.msra.mxu0 %v198
    %276 = vmatprep.subr.mxu0 %v201
    %277 = vmatpush1.msra.mxu0 %v200
    %278 = vmatprep.subr.mxu0 %v203
    %279 = vmatpush1.msra.mxu0 %v202
    %280 = vmatprep.subr.mxu0 %v205
    %281 = vmatpush1.msra.mxu0 %v204
    %282 = vmatprep.subr.mxu0 %v207
    %283 = vmatpush1.msra.mxu0 %v206
    %284 = vmatprep.subr.mxu0 %v209
    %285 = vmatpush1.msra.mxu0 %v208
    %286 = vmatprep.subr.mxu0 %v211
    %287 = vmatpush1.msra.mxu0 %v210
    %288 = vmatprep.subr.mxu0 %v213
    %289 = vmatpush1.msra.mxu0 %v212
    %290 = vmatprep.subr.mxu0 %v215
    %291 = vmatpush1.msra.mxu0 %v214
    %292 = vmatprep.subr.mxu0 %v217
    %293 = vmatpush1.msra.mxu0 %v216
    %294 = vmatprep.subr.mxu0 %v219
    %295 = vmatpush1.msra.mxu0 %v218
    %296 = vmatprep.subr.mxu0 %v221
    %297 = vmatpush1.msra.mxu0 %v220
    %298 = vmatprep.subr.mxu0 %v223
    %299 = vmatpush1.msra.mxu0 %v222
    %300 = vmatprep.subr.mxu0 %v225
    %301 = vmatpush1.msra.mxu0 %v224
    %302 = vmatprep.subr.mxu0 %v227
    %303 = vmatpush1.msra.mxu0 %v226
    %304 = vmatprep.subr.mxu0 %v229
    %305 = vmatpush1.msra.mxu0 %v228
    %306 = vmatprep.subr.mxu0 %v231
    %307 = vmatpush1.msra.mxu0 %v230
    %308 = vmatprep.subr.mxu0 %v233
    %309 = vmatpush1.msra.mxu0 %v232
    %310 = vmatprep.subr.mxu0 %v235
    %311 = vmatpush1.msra.mxu0 %v234
    %312 = vmatprep.subr.mxu0 %v237
    %313 = vmatpush1.msra.mxu0 %v236
    %314 = vmatprep.mubr.f32.mxu0 %v173
    %315 = vmatmul.mubr.f32.gmra.mrb[0].mxu0 %v172
    %v316 = vpop.f32.mrb[0].mxu0
    %v317 = vadd.f32 %v243, %v316
    %v318 = vpop.f32.mrb[0].mxu0
    %v319 = vadd.f32 %v247, %v318
    %320 = vdwg.mxu0
    %v321 = vtanh.pop %v317
    %v322 = vtanh.pop %v319
    %s323 = scalar_lea.vmem [#allocation7], 512
    %v324 = vld [vmem:[%s323] sm:$0xff]
    %v325 = vld [vmem:[%s323 + $0x8] sm:$0xff]
    %v326 = vld [vmem:[%s323 + $0x10] sm:$0xff]
    %v327 = vld [vmem:[%s323 + $0x18] sm:$0xff]
    %v328 = vld [vmem:[%s323 + $0x20] sm:$0xff]
    %v329 = vld [vmem:[%s323 + $0x28] sm:$0xff]
    %v330 = vld [vmem:[%s323 + $0x30] sm:$0xff]
    %v331 = vld [vmem:[%s323 + $0x38] sm:$0xff]
    %v332 = vld [vmem:[%s323 + $0x40] sm:$0xff]
    %v333 = vld [vmem:[%s323 + $0x48] sm:$0xff]
    %v334 = vld [vmem:[%s323 + $0x50] sm:$0xff]
    %v335 = vld [vmem:[%s323 + $0x58] sm:$0xff]
    %v336 = vld [vmem:[%s323 + $0x60] sm:$0xff]
    %v337 = vld [vmem:[%s323 + $0x68] sm:$0xff]
    %v338 = vld [vmem:[%s323 + $0x70] sm:$0xff]
    %v339 = vld [vmem:[%s323 + $0x78] sm:$0xff]
    %v340 = vld [vmem:[%s323 + $0x80] sm:$0xff]
    %v341 = vld [vmem:[%s323 + $0x88] sm:$0xff]
    %v342 = vld [vmem:[%s323 + $0x90] sm:$0xff]
    %v343 = vld [vmem:[%s323 + $0x98] sm:$0xff]
    %v344 = vld [vmem:[%s323 + $0xa0] sm:$0xff]
    %v345 = vld [vmem:[%s323 + $0xa8] sm:$0xff]
    %v346 = vld [vmem:[%s323 + $0xb0] sm:$0xff]
    %v347 = vld [vmem:[%s323 + $0xb8] sm:$0xff]
    %v348 = vld [vmem:[%s323 + $0xc0] sm:$0xff]
    %v349 = vld [vmem:[%s323 + $0xc8] sm:$0xff]
    %v350 = vld [vmem:[%s323 + $0xd0] sm:$0xff]
    %v351 = vld [vmem:[%s323 + $0xd8] sm:$0xff]
    %v352 = vld [vmem:[%s323 + $0xe0] sm:$0xff]
    %v353 = vld [vmem:[%s323 + $0xe8] sm:$0xff]
    %v354 = vld [vmem:[%s323 + $0xf0] sm:$0xff]
    %v355 = vld [vmem:[%s323 + $0xf8] sm:$0xff]
    %v356 = vld [vmem:[%s323 + $0x100] sm:$0xff]
    %v357 = vld [vmem:[%s323 + $0x108] sm:$0xff]
    %v358 = vld [vmem:[%s323 + $0x110] sm:$0xff]
    %v359 = vld [vmem:[%s323 + $0x118] sm:$0xff]
    %v360 = vld [vmem:[%s323 + $0x120] sm:$0xff]
    %v361 = vld [vmem:[%s323 + $0x128] sm:$0xff]
    %v362 = vld [vmem:[%s323 + $0x130] sm:$0xff]
    %v363 = vld [vmem:[%s323 + $0x138] sm:$0xff]
    %v364 = vld [vmem:[%s323 + $0x140] sm:$0xff]
    %v365 = vld [vmem:[%s323 + $0x148] sm:$0xff]
    %v366 = vld [vmem:[%s323 + $0x150] sm:$0xff]
    %v367 = vld [vmem:[%s323 + $0x158] sm:$0xff]
    %v368 = vld [vmem:[%s323 + $0x160] sm:$0xff]
    %v369 = vld [vmem:[%s323 + $0x168] sm:$0xff]
    %v370 = vld [vmem:[%s323 + $0x170] sm:$0xff]
    %v371 = vld [vmem:[%s323 + $0x178] sm:$0xff]
    %v372 = vld [vmem:[%s323 + $0x180] sm:$0xff]
    %v373 = vld [vmem:[%s323 + $0x188] sm:$0xff]
    %v374 = vld [vmem:[%s323 + $0x190] sm:$0xff]
    %v375 = vld [vmem:[%s323 + $0x198] sm:$0xff]
    %v376 = vld [vmem:[%s323 + $0x1a0] sm:$0xff]
    %v377 = vld [vmem:[%s323 + $0x1a8] sm:$0xff]
    %v378 = vld [vmem:[%s323 + $0x1b0] sm:$0xff]
    %v379 = vld [vmem:[%s323 + $0x1b8] sm:$0xff]
    %v380 = vld [vmem:[%s323 + $0x1c0] sm:$0xff]
    %v381 = vld [vmem:[%s323 + $0x1c8] sm:$0xff]
    %v382 = vld [vmem:[%s323 + $0x1d0] sm:$0xff]
    %v383 = vld [vmem:[%s323 + $0x1d8] sm:$0xff]
    %v384 = vld [vmem:[%s323 + $0x1e0] sm:$0xff]
    %v385 = vld [vmem:[%s323 + $0x1e8] sm:$0xff]
    %v386 = vld [vmem:[%s323 + $0x1f0] sm:$0xff]
    %v387 = vld [vmem:[%s323 + $0x1f8] sm:$0xff]
    %s388 = scalar_lea.vmem %s4, 2
    %v389 = vld [vmem:[%s388] sm:$0x3]
    %v391 = vlaneseq
    %v392 = vshrl.u32 %v391, 7
    %v393 = vsub.s32 0, %v392
    %v394 = vrot.slane %v389, %v393
    %v395 = vlaneseq
    %v396 = vshrl.u32 %v395, 7
    %v397 = vsub.s32 1, %v396
    %v398 = vrot.slane %v389, %v397
    %401 = vmatprep.subr.mxu0 %v325
    %402 = vmatpush1.msra.mxu0 %v324
    %403 = vmatprep.subr.mxu0 %v327
    %404 = vmatpush1.msra.mxu0 %v326
    %405 = vmatprep.subr.mxu0 %v329
    %406 = vmatpush1.msra.mxu0 %v328
    %407 = vmatprep.subr.mxu0 %v331
    %408 = vmatpush1.msra.mxu0 %v330
    %409 = vmatprep.subr.mxu0 %v333
    %410 = vmatpush1.msra.mxu0 %v332
    %411 = vmatprep.subr.mxu0 %v335
    %412 = vmatpush1.msra.mxu0 %v334
    %413 = vmatprep.subr.mxu0 %v337
    %414 = vmatpush1.msra.mxu0 %v336
    %415 = vmatprep.subr.mxu0 %v339
    %416 = vmatpush1.msra.mxu0 %v338
    %417 = vmatprep.subr.mxu0 %v341
    %418 = vmatpush1.msra.mxu0 %v340
    %419 = vmatprep.subr.mxu0 %v343
    %420 = vmatpush1.msra.mxu0 %v342
    %421 = vmatprep.subr.mxu0 %v345
    %422 = vmatpush1.msra.mxu0 %v344
    %423 = vmatprep.subr.mxu0 %v347
    %424 = vmatpush1.msra.mxu0 %v346
    %425 = vmatprep.subr.mxu0 %v349
    %426 = vmatpush1.msra.mxu0 %v348
    %427 = vmatprep.subr.mxu0 %v351
    %428 = vmatpush1.msra.mxu0 %v350
    %429 = vmatprep.subr.mxu0 %v353
    %430 = vmatpush1.msra.mxu0 %v352
    %431 = vmatprep.subr.mxu0 %v355
    %432 = vmatpush1.msra.mxu0 %v354
    %433 = vmatprep.subr.mxu0 %v357
    %434 = vmatpush1.msra.mxu0 %v356
    %435 = vmatprep.subr.mxu0 %v359
    %436 = vmatpush1.msra.mxu0 %v358
    %437 = vmatprep.subr.mxu0 %v361
    %438 = vmatpush1.msra.mxu0 %v360
    %439 = vmatprep.subr.mxu0 %v363
    %440 = vmatpush1.msra.mxu0 %v362
    %441 = vmatprep.subr.mxu0 %v365
    %442 = vmatpush1.msra.mxu0 %v364
    %443 = vmatprep.subr.mxu0 %v367
    %444 = vmatpush1.msra.mxu0 %v366
    %445 = vmatprep.subr.mxu0 %v369
    %446 = vmatpush1.msra.mxu0 %v368
    %447 = vmatprep.subr.mxu0 %v371
    %448 = vmatpush1.msra.mxu0 %v370
    %449 = vmatprep.subr.mxu0 %v373
    %450 = vmatpush1.msra.mxu0 %v372
    %451 = vmatprep.subr.mxu0 %v375
    %452 = vmatpush1.msra.mxu0 %v374
    %453 = vmatprep.subr.mxu0 %v377
    %454 = vmatpush1.msra.mxu0 %v376
    %455 = vmatprep.subr.mxu0 %v379
    %456 = vmatpush1.msra.mxu0 %v378
    %457 = vmatprep.subr.mxu0 %v381
    %458 = vmatpush1.msra.mxu0 %v380
    %459 = vmatprep.subr.mxu0 %v383
    %460 = vmatpush1.msra.mxu0 %v382
    %461 = vmatprep.subr.mxu0 %v385
    %462 = vmatpush1.msra.mxu0 %v384
    %463 = vmatprep.subr.mxu0 %v387
    %464 = vmatpush1.msra.mxu0 %v386
    %465 = vmatprep.mubr.f32.mxu0 %v322
    %466 = vmatmul.mubr.f32.gmra.mrb[0].mxu0 %v321
    %v467 = vpop.f32.mrb[0].mxu0
    %v468 = vadd.f32 %v394, %v467
    %v469 = vpop.f32.mrb[0].mxu0
    %v470 = vadd.f32 %v398, %v469
    %471 = vdwg.mxu0
    %v472 = vtanh.pop %v468
    %v473 = vtanh.pop %v470
    %s474 = scalar_lea.vmem [#allocation7], 1024
    %v475 = vld [vmem:[%s474] sm:$0xff]
    %v476 = vld [vmem:[%s474 + $0x8] sm:$0xff]
    %v477 = vld [vmem:[%s474 + $0x10] sm:$0xff]
    %v478 = vld [vmem:[%s474 + $0x18] sm:$0xff]
    %v479 = vld [vmem:[%s474 + $0x20] sm:$0xff]
    %v480 = vld [vmem:[%s474 + $0x28] sm:$0xff]
    %v481 = vld [vmem:[%s474 + $0x30] sm:$0xff]
    %v482 = vld [vmem:[%s474 + $0x38] sm:$0xff]
    %v483 = vld [vmem:[%s474 + $0x40] sm:$0xff]
    %v484 = vld [vmem:[%s474 + $0x48] sm:$0xff]
    %v485 = vld [vmem:[%s474 + $0x50] sm:$0xff]
    %v486 = vld [vmem:[%s474 + $0x58] sm:$0xff]
    %v487 = vld [vmem:[%s474 + $0x60] sm:$0xff]
    %v488 = vld [vmem:[%s474 + $0x68] sm:$0xff]
    %v489 = vld [vmem:[%s474 + $0x70] sm:$0xff]
    %v490 = vld [vmem:[%s474 + $0x78] sm:$0xff]
    %v491 = vld [vmem:[%s474 + $0x80] sm:$0xff]
    %v492 = vld [vmem:[%s474 + $0x88] sm:$0xff]
    %v493 = vld [vmem:[%s474 + $0x90] sm:$0xff]
    %v494 = vld [vmem:[%s474 + $0x98] sm:$0xff]
    %v495 = vld [vmem:[%s474 + $0xa0] sm:$0xff]
    %v496 = vld [vmem:[%s474 + $0xa8] sm:$0xff]
    %v497 = vld [vmem:[%s474 + $0xb0] sm:$0xff]
    %v498 = vld [vmem:[%s474 + $0xb8] sm:$0xff]
    %v499 = vld [vmem:[%s474 + $0xc0] sm:$0xff]
    %v500 = vld [vmem:[%s474 + $0xc8] sm:$0xff]
    %v501 = vld [vmem:[%s474 + $0xd0] sm:$0xff]
    %v502 = vld [vmem:[%s474 + $0xd8] sm:$0xff]
    %v503 = vld [vmem:[%s474 + $0xe0] sm:$0xff]
    %v504 = vld [vmem:[%s474 + $0xe8] sm:$0xff]
    %v505 = vld [vmem:[%s474 + $0xf0] sm:$0xff]
    %v506 = vld [vmem:[%s474 + $0xf8] sm:$0xff]
    %v507 = vld [vmem:[%s474 + $0x100] sm:$0xff]
    %v508 = vld [vmem:[%s474 + $0x108] sm:$0xff]
    %v509 = vld [vmem:[%s474 + $0x110] sm:$0xff]
    %v510 = vld [vmem:[%s474 + $0x118] sm:$0xff]
    %v511 = vld [vmem:[%s474 + $0x120] sm:$0xff]
    %v512 = vld [vmem:[%s474 + $0x128] sm:$0xff]
    %v513 = vld [vmem:[%s474 + $0x130] sm:$0xff]
    %v514 = vld [vmem:[%s474 + $0x138] sm:$0xff]
    %v515 = vld [vmem:[%s474 + $0x140] sm:$0xff]
    %v516 = vld [vmem:[%s474 + $0x148] sm:$0xff]
    %v517 = vld [vmem:[%s474 + $0x150] sm:$0xff]
    %v518 = vld [vmem:[%s474 + $0x158] sm:$0xff]
    %v519 = vld [vmem:[%s474 + $0x160] sm:$0xff]
    %v520 = vld [vmem:[%s474 + $0x168] sm:$0xff]
    %v521 = vld [vmem:[%s474 + $0x170] sm:$0xff]
    %v522 = vld [vmem:[%s474 + $0x178] sm:$0xff]
    %v523 = vld [vmem:[%s474 + $0x180] sm:$0xff]
    %v524 = vld [vmem:[%s474 + $0x188] sm:$0xff]
    %v525 = vld [vmem:[%s474 + $0x190] sm:$0xff]
    %v526 = vld [vmem:[%s474 + $0x198] sm:$0xff]
    %v527 = vld [vmem:[%s474 + $0x1a0] sm:$0xff]
    %v528 = vld [vmem:[%s474 + $0x1a8] sm:$0xff]
    %v529 = vld [vmem:[%s474 + $0x1b0] sm:$0xff]
    %v530 = vld [vmem:[%s474 + $0x1b8] sm:$0xff]
    %v531 = vld [vmem:[%s474 + $0x1c0] sm:$0xff]
    %v532 = vld [vmem:[%s474 + $0x1c8] sm:$0xff]
    %v533 = vld [vmem:[%s474 + $0x1d0] sm:$0xff]
    %v534 = vld [vmem:[%s474 + $0x1d8] sm:$0xff]
    %v535 = vld [vmem:[%s474 + $0x1e0] sm:$0xff]
    %v536 = vld [vmem:[%s474 + $0x1e8] sm:$0xff]
    %v537 = vld [vmem:[%s474 + $0x1f0] sm:$0xff]
    %v538 = vld [vmem:[%s474 + $0x1f8] sm:$0xff]
    %s539 = scalar_lea.vmem %s4, 4
    %v540 = vld [vmem:[%s539] sm:$0x3]
    %v542 = vlaneseq
    %v543 = vshrl.u32 %v542, 7
    %v544 = vsub.s32 0, %v543
    %v545 = vrot.slane %v540, %v544
    %v546 = vlaneseq
    %v547 = vshrl.u32 %v546, 7
    %v548 = vsub.s32 1, %v547
    %v549 = vrot.slane %v540, %v548
    %552 = vmatprep.subr.mxu0 %v476
    %553 = vmatpush1.msra.mxu0 %v475
    %554 = vmatprep.subr.mxu0 %v478
    %555 = vmatpush1.msra.mxu0 %v477
    %556 = vmatprep.subr.mxu0 %v480
    %557 = vmatpush1.msra.mxu0 %v479
    %558 = vmatprep.subr.mxu0 %v482
    %559 = vmatpush1.msra.mxu0 %v481
    %560 = vmatprep.subr.mxu0 %v484
    %561 = vmatpush1.msra.mxu0 %v483
    %562 = vmatprep.subr.mxu0 %v486
    %563 = vmatpush1.msra.mxu0 %v485
    %564 = vmatprep.subr.mxu0 %v488
    %565 = vmatpush1.msra.mxu0 %v487
    %566 = vmatprep.subr.mxu0 %v490
    %567 = vmatpush1.msra.mxu0 %v489
    %568 = vmatprep.subr.mxu0 %v492
    %569 = vmatpush1.msra.mxu0 %v491
    %570 = vmatprep.subr.mxu0 %v494
    %571 = vmatpush1.msra.mxu0 %v493
    %572 = vmatprep.subr.mxu0 %v496
    %573 = vmatpush1.msra.mxu0 %v495
    %574 = vmatprep.subr.mxu0 %v498
    %575 = vmatpush1.msra.mxu0 %v497
    %576 = vmatprep.subr.mxu0 %v500
    %577 = vmatpush1.msra.mxu0 %v499
    %578 = vmatprep.subr.mxu0 %v502
    %579 = vmatpush1.msra.mxu0 %v501
    %580 = vmatprep.subr.mxu0 %v504
    %581 = vmatpush1.msra.mxu0 %v503
    %582 = vmatprep.subr.mxu0 %v506
    %583 = vmatpush1.msra.mxu0 %v505
    %584 = vmatprep.subr.mxu0 %v508
    %585 = vmatpush1.msra.mxu0 %v507
    %586 = vmatprep.subr.mxu0 %v510
    %587 = vmatpush1.msra.mxu0 %v509
    %588 = vmatprep.subr.mxu0 %v512
    %589 = vmatpush1.msra.mxu0 %v511
    %590 = vmatprep.subr.mxu0 %v514
    %591 = vmatpush1.msra.mxu0 %v513
    %592 = vmatprep.subr.mxu0 %v516
    %593 = vmatpush1.msra.mxu0 %v515
    %594 = vmatprep.subr.mxu0 %v518
    %595 = vmatpush1.msra.mxu0 %v517
    %596 = vmatprep.subr.mxu0 %v520
    %597 = vmatpush1.msra.mxu0 %v519
    %598 = vmatprep.subr.mxu0 %v522
    %599 = vmatpush1.msra.mxu0 %v521
    %600 = vmatprep.subr.mxu0 %v524
    %601 = vmatpush1.msra.mxu0 %v523
    %602 = vmatprep.subr.mxu0 %v526
    %603 = vmatpush1.msra.mxu0 %v525
    %604 = vmatprep.subr.mxu0 %v528
    %605 = vmatpush1.msra.mxu0 %v527
    %606 = vmatprep.subr.mxu0 %v530
    %607 = vmatpush1.msra.mxu0 %v529
    %608 = vmatprep.subr.mxu0 %v532
    %609 = vmatpush1.msra.mxu0 %v531
    %610 = vmatprep.subr.mxu0 %v534
    %611 = vmatpush1.msra.mxu0 %v533
    %612 = vmatprep.subr.mxu0 %v536
    %613 = vmatpush1.msra.mxu0 %v535
    %614 = vmatprep.subr.mxu0 %v538
    %615 = vmatpush1.msra.mxu0 %v537
    %616 = vmatprep.mubr.f32.mxu0 %v473
    %617 = vmatmul.mubr.f32.gmra.mrb[0].mxu0 %v472
    %v618 = vpop.f32.mrb[0].mxu0
    %v619 = vadd.f32 %v545, %v618
    %v620 = vpop.f32.mrb[0].mxu0
    %v621 = vadd.f32 %v549, %v620
    %622 = vdwg.mxu0
    %v623 = vtanh.pop %v619
    %v624 = vtanh.pop %v621
    %s625 = scalar_lea.vmem [#allocation7], 1536
    %v626 = vld [vmem:[%s625] sm:$0xff]
    %v627 = vld [vmem:[%s625 + $0x8] sm:$0xff]
    %v628 = vld [vmem:[%s625 + $0x10] sm:$0xff]
    %v629 = vld [vmem:[%s625 + $0x18] sm:$0xff]
    %v630 = vld [vmem:[%s625 + $0x20] sm:$0xff]
    %v631 = vld [vmem:[%s625 + $0x28] sm:$0xff]
    %v632 = vld [vmem:[%s625 + $0x30] sm:$0xff]
    %v633 = vld [vmem:[%s625 + $0x38] sm:$0xff]
    %v634 = vld [vmem:[%s625 + $0x40] sm:$0xff]
    %v635 = vld [vmem:[%s625 + $0x48] sm:$0xff]
    %v636 = vld [vmem:[%s625 + $0x50] sm:$0xff]
    %v637 = vld [vmem:[%s625 + $0x58] sm:$0xff]
    %v638 = vld [vmem:[%s625 + $0x60] sm:$0xff]
    %v639 = vld [vmem:[%s625 + $0x68] sm:$0xff]
    %v640 = vld [vmem:[%s625 + $0x70] sm:$0xff]
    %v641 = vld [vmem:[%s625 + $0x78] sm:$0xff]
    %v642 = vld [vmem:[%s625 + $0x80] sm:$0xff]
    %v643 = vld [vmem:[%s625 + $0x88] sm:$0xff]
    %v644 = vld [vmem:[%s625 + $0x90] sm:$0xff]
    %v645 = vld [vmem:[%s625 + $0x98] sm:$0xff]
    %v646 = vld [vmem:[%s625 + $0xa0] sm:$0xff]
    %v647 = vld [vmem:[%s625 + $0xa8] sm:$0xff]
    %v648 = vld [vmem:[%s625 + $0xb0] sm:$0xff]
    %v649 = vld [vmem:[%s625 + $0xb8] sm:$0xff]
    %v650 = vld [vmem:[%s625 + $0xc0] sm:$0xff]
    %v651 = vld [vmem:[%s625 + $0xc8] sm:$0xff]
    %v652 = vld [vmem:[%s625 + $0xd0] sm:$0xff]
    %v653 = vld [vmem:[%s625 + $0xd8] sm:$0xff]
    %v654 = vld [vmem:[%s625 + $0xe0] sm:$0xff]
    %v655 = vld [vmem:[%s625 + $0xe8] sm:$0xff]
    %v656 = vld [vmem:[%s625 + $0xf0] sm:$0xff]
    %v657 = vld [vmem:[%s625 + $0xf8] sm:$0xff]
    %v658 = vld [vmem:[%s625 + $0x100] sm:$0xff]
    %v659 = vld [vmem:[%s625 + $0x108] sm:$0xff]
    %v660 = vld [vmem:[%s625 + $0x110] sm:$0xff]
    %v661 = vld [vmem:[%s625 + $0x118] sm:$0xff]
    %v662 = vld [vmem:[%s625 + $0x120] sm:$0xff]
    %v663 = vld [vmem:[%s625 + $0x128] sm:$0xff]
    %v664 = vld [vmem:[%s625 + $0x130] sm:$0xff]
    %v665 = vld [vmem:[%s625 + $0x138] sm:$0xff]
    %v666 = vld [vmem:[%s625 + $0x140] sm:$0xff]
    %v667 = vld [vmem:[%s625 + $0x148] sm:$0xff]
    %v668 = vld [vmem:[%s625 + $0x150] sm:$0xff]
    %v669 = vld [vmem:[%s625 + $0x158] sm:$0xff]
    %v670 = vld [vmem:[%s625 + $0x160] sm:$0xff]
    %v671 = vld [vmem:[%s625 + $0x168] sm:$0xff]
    %v672 = vld [vmem:[%s625 + $0x170] sm:$0xff]
    %v673 = vld [vmem:[%s625 + $0x178] sm:$0xff]
    %v674 = vld [vmem:[%s625 + $0x180] sm:$0xff]
    %v675 = vld [vmem:[%s625 + $0x188] sm:$0xff]
    %v676 = vld [vmem:[%s625 + $0x190] sm:$0xff]
    %v677 = vld [vmem:[%s625 + $0x198] sm:$0xff]
    %v678 = vld [vmem:[%s625 + $0x1a0] sm:$0xff]
    %v679 = vld [vmem:[%s625 + $0x1a8] sm:$0xff]
    %v680 = vld [vmem:[%s625 + $0x1b0] sm:$0xff]
    %v681 = vld [vmem:[%s625 + $0x1b8] sm:$0xff]
    %v682 = vld [vmem:[%s625 + $0x1c0] sm:$0xff]
    %v683 = vld [vmem:[%s625 + $0x1c8] sm:$0xff]
    %v684 = vld [vmem:[%s625 + $0x1d0] sm:$0xff]
    %v685 = vld [vmem:[%s625 + $0x1d8] sm:$0xff]
    %v686 = vld [vmem:[%s625 + $0x1e0] sm:$0xff]
    %v687 = vld [vmem:[%s625 + $0x1e8] sm:$0xff]
    %v688 = vld [vmem:[%s625 + $0x1f0] sm:$0xff]
    %v689 = vld [vmem:[%s625 + $0x1f8] sm:$0xff]
    %s690 = scalar_lea.vmem %s4, 6
    %v691 = vld [vmem:[%s690] sm:$0x3]
    %v693 = vlaneseq
    %v694 = vshrl.u32 %v693, 7
    %v695 = vsub.s32 0, %v694
    %v696 = vrot.slane %v691, %v695
    %v697 = vlaneseq
    %v698 = vshrl.u32 %v697, 7
    %v699 = vsub.s32 1, %v698
    %v700 = vrot.slane %v691, %v699
    %703 = vmatprep.subr.mxu0 %v627
    %704 = vmatpush1.msra.mxu0 %v626
    %705 = vmatprep.subr.mxu0 %v629
    %706 = vmatpush1.msra.mxu0 %v628
    %707 = vmatprep.subr.mxu0 %v631
    %708 = vmatpush1.msra.mxu0 %v630
    %709 = vmatprep.subr.mxu0 %v633
    %710 = vmatpush1.msra.mxu0 %v632
    %711 = vmatprep.subr.mxu0 %v635
    %712 = vmatpush1.msra.mxu0 %v634
    %713 = vmatprep.subr.mxu0 %v637
    %714 = vmatpush1.msra.mxu0 %v636
    %715 = vmatprep.subr.mxu0 %v639
    %716 = vmatpush1.msra.mxu0 %v638
    %717 = vmatprep.subr.mxu0 %v641
    %718 = vmatpush1.msra.mxu0 %v640
    %719 = vmatprep.subr.mxu0 %v643
    %720 = vmatpush1.msra.mxu0 %v642
    %721 = vmatprep.subr.mxu0 %v645
    %722 = vmatpush1.msra.mxu0 %v644
    %723 = vmatprep.subr.mxu0 %v647
    %724 = vmatpush1.msra.mxu0 %v646
    %725 = vmatprep.subr.mxu0 %v649
    %726 = vmatpush1.msra.mxu0 %v648
    %727 = vmatprep.subr.mxu0 %v651
    %728 = vmatpush1.msra.mxu0 %v650
    %729 = vmatprep.subr.mxu0 %v653
    %730 = vmatpush1.msra.mxu0 %v652
    %731 = vmatprep.subr.mxu0 %v655
    %732 = vmatpush1.msra.mxu0 %v654
    %733 = vmatprep.subr.mxu0 %v657
    %734 = vmatpush1.msra.mxu0 %v656
    %735 = vmatprep.subr.mxu0 %v659
    %736 = vmatpush1.msra.mxu0 %v658
    %737 = vmatprep.subr.mxu0 %v661
    %738 = vmatpush1.msra.mxu0 %v660
    %739 = vmatprep.subr.mxu0 %v663
    %740 = vmatpush1.msra.mxu0 %v662
    %741 = vmatprep.subr.mxu0 %v665
    %742 = vmatpush1.msra.mxu0 %v664
    %743 = vmatprep.subr.mxu0 %v667
    %744 = vmatpush1.msra.mxu0 %v666
    %745 = vmatprep.subr.mxu0 %v669
    %746 = vmatpush1.msra.mxu0 %v668
    %747 = vmatprep.subr.mxu0 %v671
    %748 = vmatpush1.msra.mxu0 %v670
    %749 = vmatprep.subr.mxu0 %v673
    %750 = vmatpush1.msra.mxu0 %v672
    %751 = vmatprep.subr.mxu0 %v675
    %752 = vmatpush1.msra.mxu0 %v674
    %753 = vmatprep.subr.mxu0 %v677
    %754 = vmatpush1.msra.mxu0 %v676
    %755 = vmatprep.subr.mxu0 %v679
    %756 = vmatpush1.msra.mxu0 %v678
    %757 = vmatprep.subr.mxu0 %v681
    %758 = vmatpush1.msra.mxu0 %v680
    %759 = vmatprep.subr.mxu0 %v683
    %760 = vmatpush1.msra.mxu0 %v682
    %761 = vmatprep.subr.mxu0 %v685
    %762 = vmatpush1.msra.mxu0 %v684
    %763 = vmatprep.subr.mxu0 %v687
    %764 = vmatpush1.msra.mxu0 %v686
    %765 = vmatprep.subr.mxu0 %v689
    %766 = vmatpush1.msra.mxu0 %v688
    %767 = vmatprep.mubr.f32.mxu0 %v624
    %768 = vmatmul.mubr.f32.gmra.mrb[0].mxu0 %v623
    %v769 = vpop.f32.mrb[0].mxu0
    %v770 = vadd.f32 %v696, %v769
    %v771 = vpop.f32.mrb[0].mxu0
    %v772 = vadd.f32 %v700, %v771
    %773 = vdwg.mxu0
    %v774 = vtanh.pop %v770
    %v775 = vtanh.pop %v772
    %776 = vmatprep.subr.mxu0 %v627
    %777 = vmatpush1.msra.mxu0 %v626
    %778 = vmatprep.subr.mxu0 %v629
    %779 = vmatpush1.msra.mxu0 %v628
    %780 = vmatprep.subr.mxu0 %v631
    %781 = vmatpush1.msra.mxu0 %v630
    %782 = vmatprep.subr.mxu0 %v633
    %783 = vmatpush1.msra.mxu0 %v632
    %784 = vmatprep.subr.mxu0 %v635
    %785 = vmatpush1.msra.mxu0 %v634
    %786 = vmatprep.subr.mxu0 %v637
    %787 = vmatpush1.msra.mxu0 %v636
    %788 = vmatprep.subr.mxu0 %v639
    %789 = vmatpush1.msra.mxu0 %v638
    %790 = vmatprep.subr.mxu0 %v641
    %791 = vmatpush1.msra.mxu0 %v640
    %792 = vmatprep.subr.mxu0 %v643
    %793 = vmatpush1.msra.mxu0 %v642
    %794 = vmatprep.subr.mxu0 %v645
    %795 = vmatpush1.msra.mxu0 %v644
    %796 = vmatprep.subr.mxu0 %v647
    %797 = vmatpush1.msra.mxu0 %v646
    %798 = vmatprep.subr.mxu0 %v649
    %799 = vmatpush1.msra.mxu0 %v648
    %800 = vmatprep.subr.mxu0 %v651
    %801 = vmatpush1.msra.mxu0 %v650
    %802 = vmatprep.subr.mxu0 %v653
    %803 = vmatpush1.msra.mxu0 %v652
    %804 = vmatprep.subr.mxu0 %v655
    %805 = vmatpush1.msra.mxu0 %v654
    %806 = vmatprep.subr.mxu0 %v657
    %807 = vmatpush1.msra.mxu0 %v656
    %808 = vmatprep.subr.mxu0 %v659
    %809 = vmatpush1.msra.mxu0 %v658
    %810 = vmatprep.subr.mxu0 %v661
    %811 = vmatpush1.msra.mxu0 %v660
    %812 = vmatprep.subr.mxu0 %v663
    %813 = vmatpush1.msra.mxu0 %v662
    %814 = vmatprep.subr.mxu0 %v665
    %815 = vmatpush1.msra.mxu0 %v664
    %816 = vmatprep.subr.mxu0 %v667
    %817 = vmatpush1.msra.mxu0 %v666
    %818 = vmatprep.subr.mxu0 %v669
    %819 = vmatpush1.msra.mxu0 %v668
    %820 = vmatprep.subr.mxu0 %v671
    %821 = vmatpush1.msra.mxu0 %v670
    %822 = vmatprep.subr.mxu0 %v673
    %823 = vmatpush1.msra.mxu0 %v672
    %824 = vmatprep.subr.mxu0 %v675
    %825 = vmatpush1.msra.mxu0 %v674
    %826 = vmatprep.subr.mxu0 %v677
    %827 = vmatpush1.msra.mxu0 %v676
    %828 = vmatprep.subr.mxu0 %v679
    %829 = vmatpush1.msra.mxu0 %v678
    %830 = vmatprep.subr.mxu0 %v681
    %831 = vmatpush1.msra.mxu0 %v680
    %832 = vmatprep.subr.mxu0 %v683
    %833 = vmatpush1.msra.mxu0 %v682
    %834 = vmatprep.subr.mxu0 %v685
    %835 = vmatpush1.msra.mxu0 %v684
    %836 = vmatprep.subr.mxu0 %v687
    %837 = vmatpush1.msra.mxu0 %v686
    %838 = vmatprep.subr.mxu0 %v689
    %839 = vmatpush1.msra.mxu0 %v688
    %840 = vmatprep.mubr.f32.mxu0 %v775
    %841 = vmatmul.mubr.f32.gmra.mrb[0].mxu0 %v774
    %v842 = vpop.f32.mrb[0].mxu0
    %v843 = vadd.f32 %v696, %v842
    %v844 = vpop.f32.mrb[0].mxu0
    %v845 = vadd.f32 %v700, %v844
    %846 = vdwg.mxu0
    %v847 = vtanh.pop %v843
    %v848 = vtanh.pop %v845
    %v849 = vld [vmem:[#allocation8] sm:$0xff]
    %v850 = vld [vmem:[#allocation8 + $0x8] sm:$0xff]
    %v851 = vld [vmem:[#allocation8 + $0x10] sm:$0xff]
    %v852 = vld [vmem:[#allocation8 + $0x18] sm:$0xff]
    %v853 = vld [vmem:[#allocation8 + $0x20] sm:$0xff]
    %v854 = vld [vmem:[#allocation8 + $0x28] sm:$0xff]
    %v855 = vld [vmem:[#allocation8 + $0x30] sm:$0xff]
    %v856 = vld [vmem:[#allocation8 + $0x38] sm:$0xff]
    %v857 = vld [vmem:[#allocation8 + $0x40] sm:$0xff]
    %v858 = vld [vmem:[#allocation8 + $0x48] sm:$0xff]
    %v859 = vld [vmem:[#allocation8 + $0x50] sm:$0xff]
    %v860 = vld [vmem:[#allocation8 + $0x58] sm:$0xff]
    %v861 = vld [vmem:[#allocation8 + $0x60] sm:$0xff]
    %v862 = vld [vmem:[#allocation8 + $0x68] sm:$0xff]
    %v863 = vld [vmem:[#allocation8 + $0x70] sm:$0xff]
    %v864 = vld [vmem:[#allocation8 + $0x78] sm:$0xff]
    %v865 = vld [vmem:[#allocation8 + $0x80] sm:$0xff]
    %v866 = vld [vmem:[#allocation8 + $0x88] sm:$0xff]
    %v867 = vld [vmem:[#allocation8 + $0x90] sm:$0xff]
    %v868 = vld [vmem:[#allocation8 + $0x98] sm:$0xff]
    %v869 = vld [vmem:[#allocation8 + $0xa0] sm:$0xff]
    %v870 = vld [vmem:[#allocation8 + $0xa8] sm:$0xff]
    %v871 = vld [vmem:[#allocation8 + $0xb0] sm:$0xff]
    %v872 = vld [vmem:[#allocation8 + $0xb8] sm:$0xff]
    %v873 = vld [vmem:[#allocation8 + $0xc0] sm:$0xff]
    %v874 = vld [vmem:[#allocation8 + $0xc8] sm:$0xff]
    %v875 = vld [vmem:[#allocation8 + $0xd0] sm:$0xff]
    %v876 = vld [vmem:[#allocation8 + $0xd8] sm:$0xff]
    %v877 = vld [vmem:[#allocation8 + $0xe0] sm:$0xff]
    %v878 = vld [vmem:[#allocation8 + $0xe8] sm:$0xff]
    %v879 = vld [vmem:[#allocation8 + $0xf0] sm:$0xff]
    %v880 = vld [vmem:[#allocation8 + $0xf8] sm:$0xff]
    %v881 = vld [vmem:[%s6] sm:$0x1]
    %v883 = vlaneseq
    %v884 = vshrl.u32 %v883, 7
    %v885 = vsub.s32 0, %v884
    %v886 = vrot.slane %v881, %v885
    %888 = vmatprep.subr.mxu0 0.0
    %889 = vmatpush1.msra.mxu0 %v849
    %890 = vmatprep.subr.mxu0 0.0
    %891 = vmatpush1.msra.mxu0 %v850
    %892 = vmatprep.subr.mxu0 0.0
    %893 = vmatpush1.msra.mxu0 %v851
    %894 = vmatprep.subr.mxu0 0.0
    %895 = vmatpush1.msra.mxu0 %v852
    %896 = vmatprep.subr.mxu0 0.0
    %897 = vmatpush1.msra.mxu0 %v853
    %898 = vmatprep.subr.mxu0 0.0
    %899 = vmatpush1.msra.mxu0 %v854
    %900 = vmatprep.subr.mxu0 0.0
    %901 = vmatpush1.msra.mxu0 %v855
    %902 = vmatprep.subr.mxu0 0.0
    %903 = vmatpush1.msra.mxu0 %v856
    %904 = vmatprep.subr.mxu0 0.0
    %905 = vmatpush1.msra.mxu0 %v857
    %906 = vmatprep.subr.mxu0 0.0
    %907 = vmatpush1.msra.mxu0 %v858
    %908 = vmatprep.subr.mxu0 0.0
    %909 = vmatpush1.msra.mxu0 %v859
    %910 = vmatprep.subr.mxu0 0.0
    %911 = vmatpush1.msra.mxu0 %v860
    %912 = vmatprep.subr.mxu0 0.0
    %913 = vmatpush1.msra.mxu0 %v861
    %914 = vmatprep.subr.mxu0 0.0
    %915 = vmatpush1.msra.mxu0 %v862
    %916 = vmatprep.subr.mxu0 0.0
    %917 = vmatpush1.msra.mxu0 %v863
    %918 = vmatprep.subr.mxu0 0.0
    %919 = vmatpush1.msra.mxu0 %v864
    %920 = vmatprep.subr.mxu0 0.0
    %921 = vmatpush1.msra.mxu0 %v865
    %922 = vmatprep.subr.mxu0 0.0
    %923 = vmatpush1.msra.mxu0 %v866
    %924 = vmatprep.subr.mxu0 0.0
    %925 = vmatpush1.msra.mxu0 %v867
    %926 = vmatprep.subr.mxu0 0.0
    %927 = vmatpush1.msra.mxu0 %v868
    %928 = vmatprep.subr.mxu0 0.0
    %929 = vmatpush1.msra.mxu0 %v869
    %930 = vmatprep.subr.mxu0 0.0
    %931 = vmatpush1.msra.mxu0 %v870
    %932 = vmatprep.subr.mxu0 0.0
    %933 = vmatpush1.msra.mxu0 %v871
    %934 = vmatprep.subr.mxu0 0.0
    %935 = vmatpush1.msra.mxu0 %v872
    %936 = vmatprep.subr.mxu0 0.0
    %937 = vmatpush1.msra.mxu0 %v873
    %938 = vmatprep.subr.mxu0 0.0
    %939 = vmatpush1.msra.mxu0 %v874
    %940 = vmatprep.subr.mxu0 0.0
    %941 = vmatpush1.msra.mxu0 %v875
    %942 = vmatprep.subr.mxu0 0.0
    %943 = vmatpush1.msra.mxu0 %v876
    %944 = vmatprep.subr.mxu0 0.0
    %945 = vmatpush1.msra.mxu0 %v877
    %946 = vmatprep.subr.mxu0 0.0
    %947 = vmatpush1.msra.mxu0 %v878
    %948 = vmatprep.subr.mxu0 0.0
    %949 = vmatpush1.msra.mxu0 %v879
    %950 = vmatprep.subr.mxu0 0.0
    %951 = vmatpush1.msra.mxu0 %v880
    %952 = vmatprep.mubr.f32.mxu0 %v848
    %953 = vmatmul.mubr.f32.gmra.mrb[0].mxu0 %v847
    %v954 = vpop.f32.mrb[0].mxu0
    %v955 = vadd.f32 %v886, %v954
    %v956 = vpop.f32.mrb[0].mxu0
    %957 = vdwg.mxu0
    %958 = vst [vmem:[#allocation10] sm:$0xff] %v955
    // Predicated region
    $region46: #{tpu_custom_call.1} parent=1 // pred_check
      _
    $region47: #{tpu_custom_call.1} parent=1 // pred_check_branch
      %960 = sbr.rel (0) target = $region49
    $region48: #{tpu_custom_call.1} parent=1 // pred_region
      %s962 = ssub.s32 128, 128
      %963 = vsyncadd [#allocation4], %s962
      %s965 = sshll.u32 [#allocation10], 4
      %s966 = int_to_ptr.vmem [resolvable:$true] %s965
      %968 = dma.vmem_to_hbm [thread:$0]  %s966, 128, %s7, [#allocation4]
    $region49: #{tpu_custom_call.1} parent=1 // pred_fallthru
      _
    // Predicated region
    $region50: #{tpu_custom_call.1} parent=1 // pred_check
      _
    $region51: #{tpu_custom_call.1} parent=1 // pred_check_branch
      %970 = sbr.rel (0) target = $region53
    $region52: #{tpu_custom_call.1} parent=1 // pred_region
      %971 = dma.done [#allocation4], 128
    $region53: #{tpu_custom_call.1} parent=1 // pred_fallthru
      _
    %972 = vsyncpa [#allocation3], 1
    %973 = vsyncpa [#allocation6], 1
    %974 = vsyncpa [#allocation9], 1
    %975 = vsyncpa [#allocation4], 1

</llo_original>
